<compile_context>
chip_gen: v7x
topology: tpu7x:2x2x1
jax: 0.10.0
libtpu: 0.0.40
codegen_flags: <defaults>
</compile_context>

<pallas_src>
import functools
import math

import numpy as np
import jax
import jax.numpy as jnp
from jax.experimental import pallas as pl
from jax.experimental.pallas import tpu as pltpu


# ----------------------------------------------------------------------------
# Pallas kernel: batched per-patch superpixel-consistency weighted cross-entropy
# ----------------------------------------------------------------------------
def _sp_ce_kernel(feat_ref, cam_ref, out_ref, *, ws_thr, last_block_valid):
    i = pl.program_id(0)
    feat = feat_ref[...]        # (B, C, HW) f32 : feat_aligned (roi-aligned sigmoid cam)
    cam = cam_ref[...]          # (B, C, HW) f32 : raw cam_local logits
    B, C, HW = feat.shape
    inv_hw = 1.0 / HW

    # pseudo-label agreement masks. sigmoid(cam) is monotone, so equality-to-max
    # masks on cam are identical to those on sigmoid(cam) -- sigmoid is dropped.
    crop_max = jnp.max(cam, axis=1, keepdims=True)              # (B, 1, HW)
    glob_max = jnp.max(feat, axis=1, keepdims=True)             # (B, 1, HW)
    crop_mask = cam == crop_max                                 # (B, C, HW) bool
    pselb_crop = crop_mask.astype(jnp.float32)
    pselb_global = (feat == glob_max).astype(jnp.float32)
    diff = (pselb_crop - pselb_global) ** 2                     # (B, C, HW)
    weight_same = 1.0 - jnp.sum(diff, axis=2, keepdims=True) * inv_hw   # (B, C, 1)
    weight_same = jnp.where(weight_same > ws_thr, 1.0, weight_same)

    # pselb = argmax_c softmax(sigmoid(cam_local)); softmax & sigmoid are monotone,
    # so this equals argmax of cam (first occurrence on ties).
    iota_c = jax.lax.broadcasted_iota(jnp.int32, (B, C, HW), 1)
    pselb = jnp.min(jnp.where(crop_mask, iota_c, C),
                    axis=1, keepdims=True)                      # (B, 1, HW) int32

    # Weighted 2D cross-entropy of feat_aligned vs pselb.
    # (CrossEntropy2d ignore_label=255 never triggers: pselb in [0, C-1]).
    # Reuse glob_max as the log-softmax stabilizer (same reduction).
    z = feat - glob_max
    logp = z - jnp.log(jnp.sum(jnp.exp(z), axis=1, keepdims=True))      # (B, C, HW)
    onehot = (iota_c == pselb).astype(jnp.float32)                      # (B, C, HW)
    nll = -jnp.sum(logp * onehot, axis=1, keepdims=True)                # (B, 1, HW)
    w_t = jnp.sum(weight_same * onehot, axis=1, keepdims=True)          # (B, 1, HW)

    nll_sum = jnp.sum(nll * w_t, axis=2, keepdims=True)                 # (B, 1, 1)
    wt_sum = jnp.sum(w_t, axis=2, keepdims=True)                        # (B, 1, 1)
    wt_sum = jnp.maximum(wt_sum, 1e-12)      # cheap guard against all-zero weights
    per_patch = nll_sum * pl.reciprocal(wt_sum, approx=True)            # (B, 1, 1)

    # Only the last block may contain padded patches; their count is static.
    if last_block_valid == B:
        block_loss = jnp.sum(per_patch)
    else:
        block_loss = jnp.where(i == pl.num_programs(0) - 1,
                               jnp.sum(per_patch[:last_block_valid]),
                               jnp.sum(per_patch))

    @pl.when(i == 0)
    def _():
        out_ref[...] = jnp.zeros_like(out_ref)

    out_ref[...] += block_loss


def sp_ce_loss_pallas(feat_aligned, cam_local, *, ws_thr=0.8, weight_sp=0.5,
                      loss_weight=1.0):
    """feat_aligned, cam_local: (N, C, h, w) float32. Returns scalar loss."""
    N, C, H, W = feat_aligned.shape
    HW = H * W
    feat2 = feat_aligned.reshape(N, C, HW).astype(jnp.float32)
    cam2 = cam_local.reshape(N, C, HW).astype(jnp.float32)

    # Batch B patches per grid step so per-step overhead / tiny DMAs don't
    # dominate: keep 2 inputs x 2 pipeline buffers x B*C*HW*4B within a few MiB
    # (safe on v7x's smaller VMEM too).
    bytes_per_patch = C * HW * 4
    budget = 8 * 1024 * 1024
    B = max(1, min(N, budget // max(1, 4 * bytes_per_patch)))
    num_blocks = math.ceil(N / B)
    N_pad = num_blocks * B
    if N_pad != N:
        pad = N_pad - N
        feat2 = jnp.concatenate(
            [feat2, jnp.zeros((pad, C, HW), jnp.float32)], axis=0)
        cam2 = jnp.concatenate(
            [cam2, jnp.zeros((pad, C, HW), jnp.float32)], axis=0)
    last_block_valid = N - (num_blocks - 1) * B

    kernel = functools.partial(_sp_ce_kernel, ws_thr=ws_thr,
                               last_block_valid=last_block_valid)
    out = pl.pallas_call(
        kernel,
        out_shape=jax.ShapeDtypeStruct((1, 1), jnp.float32),
        grid_spec=pltpu.PrefetchScalarGridSpec(
            num_scalar_prefetch=0,
            grid=(num_blocks,),
            in_specs=[
                pl.BlockSpec((B, C, HW), lambda i: (i, 0, 0)),
                pl.BlockSpec((B, C, HW), lambda i: (i, 0, 0)),
            ],
            out_specs=pl.BlockSpec((1, 1), lambda i: (0, 0)),
        ),
        compiler_params=pltpu.CompilerParams(
            dimension_semantics=("arbitrary",)),
    )(feat2, cam2)
    # Constant factors folded out of the kernel: weight_sp, 1/total_patch, loss_weight.
    return out[0, 0] * (loss_weight * weight_sp / N)


# ----------------------------------------------------------------------------
# Plain-JAX glue: torchvision-style roi_align (aligned=False, sampling_ratio=-1)
# ----------------------------------------------------------------------------
def _bilinear(feat, y, x):
    # feat: (C, H, W); y, x: sample coord arrays of identical shape S
    H, W = feat.shape[1], feat.shape[2]
    valid = (y >= -1.0) & (y <= H) & (x >= -1.0) & (x <= W)
    y = jnp.clip(y, 0.0, H - 1)
    x = jnp.clip(x, 0.0, W - 1)
    y0 = jnp.floor(y).astype(jnp.int32)
    x0 = jnp.floor(x).astype(jnp.int32)
    y1 = jnp.minimum(y0 + 1, H - 1)
    x1 = jnp.minimum(x0 + 1, W - 1)
    ly = y - y0.astype(y.dtype)
    lx = x - x0.astype(x.dtype)
    hy, hx = 1.0 - ly, 1.0 - lx
    v = (feat[:, y0, x0] * (hy * hx)[None] + feat[:, y0, x1] * (hy * lx)[None]
         + feat[:, y1, x0] * (ly * hx)[None] + feat[:, y1, x1] * (ly * lx)[None])
    return jnp.where(valid[None], v, 0.0)


def roi_align_single(feat, box, pooled_h, pooled_w, scale):
    # feat: (C, H, W) jnp; box: concrete python (x1, y1, x2, y2) in image coords
    x1, y1, x2, y2 = box
    rsw, rsh = x1 * scale, y1 * scale
    rew, reh = x2 * scale, y2 * scale
    roi_w = max(rew - rsw, 1.0)
    roi_h = max(reh - rsh, 1.0)
    bin_h = roi_h / pooled_h
    bin_w = roi_w / pooled_w
    gh = max(int(math.ceil(roi_h / pooled_h)), 1)   # sampling_ratio=-1 (adaptive)
    gw = max(int(math.ceil(roi_w / pooled_w)), 1)
    ph = jnp.arange(pooled_h, dtype=jnp.float32)
    pw = jnp.arange(pooled_w, dtype=jnp.float32)
    iy = jnp.arange(gh, dtype=jnp.float32)
    ix = jnp.arange(gw, dtype=jnp.float32)
    y = rsh + ph[:, None] * bin_h + (iy[None, :] + 0.5) * bin_h / gh   # (ph, gh)
    x = rsw + pw[:, None] * bin_w + (ix[None, :] + 0.5) * bin_w / gw   # (pw, gw)
    yy = jnp.broadcast_to(y[:, None, :, None], (pooled_h, pooled_w, gh, gw))
    xx = jnp.broadcast_to(x[None, :, None, :], (pooled_h, pooled_w, gh, gw))
    vals = _bilinear(feat, yy, xx)                  # (C, ph, pw, gh, gw)
    return jnp.mean(vals, axis=(-1, -2))            # (C, ph, pw)


# ----------------------------------------------------------------------------
# Pure-JAX reference of the loss (for numerical check; keeps the sigmoid to
# match the PyTorch module exactly)
# ----------------------------------------------------------------------------
def reference_loss(feat_aligned, cam_local, ws_thr, weight_sp, loss_weight):
    N, C, H, W = feat_aligned.shape
    hw = H * W
    cam_s = jax.nn.sigmoid(cam_local)
    pselb_crop = (cam_s == cam_s.max(axis=1, keepdims=True)).astype(jnp.float32)
    pselb_global = (feat_aligned == feat_aligned.max(axis=1, keepdims=True)
                    ).astype(jnp.float32)
    diff = (pselb_crop - pselb_global) ** 2 / hw
    w_same = 1.0 - diff.sum(axis=(2, 3))                       # (N, C)
    w_same = jnp.where(w_same > ws_thr, 1.0, w_same)
    pselb = jnp.argmax(jax.nn.softmax(cam_s, axis=1), axis=1)  # (N, H, W)
    logp = jax.nn.log_softmax(feat_aligned, axis=1)
    losses = []
    for i in range(N):
        t = pselb[i]
        nll = -jnp.take_along_axis(logp[i], t[None], axis=0)[0]
        wt = w_same[i][t]
        losses.append(jnp.sum(nll * wt) / jnp.sum(wt) * weight_sp)
    return loss_weight * jnp.sum(jnp.stack(losses)) / N


# ----------------------------------------------------------------------------
if __name__ == "__main__":
    # Small deterministic setup consistent with the siamese branch:
    #   bs=2 images, bxs=2 patches/image -> total_patch N=4, C=4 classes,
    #   global cam 16x16 (image ~128x128 at spatial_scale 1/8), local cam 16x16.
    bs, bxs, C = 2, 2, 4
    Hg = Wg = 16
    h = w = 16
    N = bs * bxs
    ws_thr, weight_sp, loss_weight = 0.8, 0.5, 1.0

    key = jax.random.PRNGKey(0)
    k1, k2 = jax.random.split(key)
    cam_global = jax.random.normal(k1, (bs, C, Hg, Wg), dtype=jnp.float32)
    cam_local = jax.random.normal(k2, (N, C, h, w), dtype=jnp.float32)

    # crop_boxes per patch: (x1, y1, x2, y2) in image coordinates, batch ids below
    boxes = [
        (0.0, 0.0, 64.0, 64.0),
        (32.0, 32.0, 96.0, 96.0),
        (16.0, 8.0, 112.0, 120.0),
        (0.0, 40.0, 80.0, 128.0),
    ]
    box_batch = [0, 0, 1, 1]

    # feat_aligned = roi_align(sigmoid(global cam), boxes, (h, w), 1/8)  (JAX glue)
    cam_soft = jax.nn.sigmoid(cam_global)
    feat_aligned = jnp.stack(
        [roi_align_single(cam_soft[box_batch[i]], boxes[i], h, w, 1.0 / 8.0)
         for i in range(N)], axis=0)                            # (N, C, h, w)

    loss = sp_ce_loss_pallas(feat_aligned, cam_local, ws_thr=ws_thr,
                             weight_sp=weight_sp, loss_weight=loss_weight)
    loss = jax.block_until_ready(loss)

    ref = jax.block_until_ready(
        reference_loss(feat_aligned, cam_local, ws_thr, weight_sp, loss_weight))
    np.testing.assert_allclose(np.asarray(loss), np.asarray(ref),
                               rtol=2e-3, atol=1e-4)

    print("KERNEL_OK")
</pallas_src>

<mosaic_0001>
module attributes {stable_mosaic.version = 11 : i64} {
  func.func @_sp_ce_kernel(%arg0: i32, %arg1: memref<4x4x256xf32, #tpu.memory_space<vmem>>, %arg2: memref<4x4x256xf32, #tpu.memory_space<vmem>>, %arg3: memref<1x1xf32, #tpu.memory_space<vmem>>) attributes {dimension_semantics = [#tpu.dimension_semantics<arbitrary>], iteration_bounds = array<i64: 1>, scalar_prefetch = 0 : i64, scratch_operands = 0 : i64, tpu.core_type = #tpu.core_type<tc>, window_params = [{transform_indices = @transform_0, window_bounds = array<i64: 4, 4, 256>}, {transform_indices = @transform_1, window_bounds = array<i64: 4, 4, 256>}, {pipeline_mode = #tpu.pipeline_mode<synchronous>, transform_indices = @transform_2, window_bounds = array<i64: 1, 1>}]} {
    %c0 = arith.constant 0 : index
    %c0_0 = arith.constant 0 : index
    %c0_1 = arith.constant 0 : index
    %0 = vector.load %arg1[%c0, %c0_0, %c0_1] : memref<4x4x256xf32, #tpu.memory_space<vmem>>, vector<4x4x256xf32>
    %c0_2 = arith.constant 0 : index
    %c0_3 = arith.constant 0 : index
    %c0_4 = arith.constant 0 : index
    %1 = vector.load %arg2[%c0_2, %c0_3, %c0_4] : memref<4x4x256xf32, #tpu.memory_space<vmem>>, vector<4x4x256xf32>
    %cst = arith.constant dense<0xFF800000> : vector<4x256xf32>
    %2 = vector.multi_reduction <maximumf>, %1, %cst [1] : vector<4x4x256xf32> to vector<4x256xf32>
    %3 = vector.shape_cast %2 : vector<4x256xf32> to vector<4x1x256xf32>
    %cst_5 = arith.constant dense<0xFF800000> : vector<4x256xf32>
    %4 = vector.multi_reduction <maximumf>, %0, %cst_5 [1] : vector<4x4x256xf32> to vector<4x256xf32>
    %5 = vector.shape_cast %4 : vector<4x256xf32> to vector<4x1x256xf32>
    %6 = vector.broadcast %3 : vector<4x1x256xf32> to vector<4x4x256xf32>
    %7 = arith.cmpf oeq, %1, %6 : vector<4x4x256xf32>
    %8 = arith.extui %7 : vector<4x4x256xi1> to vector<4x4x256xi32>
    %9 = arith.sitofp %8 : vector<4x4x256xi32> to vector<4x4x256xf32>
    %10 = vector.broadcast %5 : vector<4x1x256xf32> to vector<4x4x256xf32>
    %11 = arith.cmpf oeq, %0, %10 : vector<4x4x256xf32>
    %12 = arith.extui %11 : vector<4x4x256xi1> to vector<4x4x256xi32>
    %13 = arith.sitofp %12 : vector<4x4x256xi32> to vector<4x4x256xf32>
    %14 = arith.subf %9, %13 : vector<4x4x256xf32>
    %15 = arith.mulf %14, %14 : vector<4x4x256xf32>
    %cst_6 = arith.constant dense<0.000000e+00> : vector<4x4xf32>
    %16 = vector.multi_reduction <add>, %15, %cst_6 [2] : vector<4x4x256xf32> to vector<4x4xf32>
    %17 = vector.shape_cast %16 : vector<4x4xf32> to vector<4x4x1xf32>
    %cst_7 = arith.constant 3.906250e-03 : f32
    %18 = vector.broadcast %cst_7 : f32 to vector<4x4x1xf32>
    %19 = arith.mulf %17, %18 : vector<4x4x1xf32>
    %cst_8 = arith.constant 1.000000e+00 : f32
    %20 = vector.broadcast %cst_8 : f32 to vector<4x4x1xf32>
    %21 = arith.subf %20, %19 : vector<4x4x1xf32>
    %cst_9 = arith.constant 8.000000e-01 : f32
    %22 = vector.broadcast %cst_9 : f32 to vector<4x4x1xf32>
    %23 = arith.cmpf ogt, %21, %22 : vector<4x4x1xf32>
    %cst_10 = arith.constant 1.000000e+00 : f32
    %24 = vector.broadcast %cst_10 : f32 to vector<4x4x1xf32>
    %25 = arith.select %23, %24, %21 : vector<4x4x1xi1>, vector<4x4x1xf32>
    %26 = tpu.iota {dimensions = array<i32: 1>} : vector<4x4x256xi32>
    %c4_i32 = arith.constant 4 : i32
    %27 = vector.broadcast %c4_i32 : i32 to vector<4x4x256xi32>
    %28 = arith.select %7, %26, %27 : vector<4x4x256xi1>, vector<4x4x256xi32>
    %cst_11 = arith.constant dense<2147483647> : vector<4x256xi32>
    %29 = vector.multi_reduction <minsi>, %28, %cst_11 [1] : vector<4x4x256xi32> to vector<4x256xi32>
    %30 = vector.shape_cast %29 : vector<4x256xi32> to vector<4x1x256xi32>
    %31 = vector.broadcast %5 : vector<4x1x256xf32> to vector<4x4x256xf32>
    %32 = arith.subf %0, %31 : vector<4x4x256xf32>
    %33 = math.exp %32 : vector<4x4x256xf32>
    %cst_12 = arith.constant dense<0.000000e+00> : vector<4x256xf32>
    %34 = vector.multi_reduction <add>, %33, %cst_12 [1] : vector<4x4x256xf32> to vector<4x256xf32>
    %35 = vector.shape_cast %34 : vector<4x256xf32> to vector<4x1x256xf32>
    %36 = math.log %35 : vector<4x1x256xf32>
    %37 = vector.broadcast %36 : vector<4x1x256xf32> to vector<4x4x256xf32>
    %38 = arith.subf %32, %37 : vector<4x4x256xf32>
    %39 = vector.broadcast %30 : vector<4x1x256xi32> to vector<4x4x256xi32>
    %40 = arith.cmpi eq, %26, %39 : vector<4x4x256xi32>
    %41 = arith.extui %40 : vector<4x4x256xi1> to vector<4x4x256xi32>
    %42 = arith.sitofp %41 : vector<4x4x256xi32> to vector<4x4x256xf32>
    %43 = arith.mulf %38, %42 : vector<4x4x256xf32>
    %cst_13 = arith.constant dense<0.000000e+00> : vector<4x256xf32>
    %44 = vector.multi_reduction <add>, %43, %cst_13 [1] : vector<4x4x256xf32> to vector<4x256xf32>
    %45 = vector.shape_cast %44 : vector<4x256xf32> to vector<4x1x256xf32>
    %cst_14 = arith.constant 0.000000e+00 : f32
    %46 = vector.broadcast %cst_14 : f32 to vector<4x1x256xf32>
    %47 = arith.subf %46, %45 : vector<4x1x256xf32>
    %48 = vector.broadcast %25 : vector<4x4x1xf32> to vector<4x4x256xf32>
    %49 = arith.mulf %48, %42 : vector<4x4x256xf32>
    %cst_15 = arith.constant dense<0.000000e+00> : vector<4x256xf32>
    %50 = vector.multi_reduction <add>, %49, %cst_15 [1] : vector<4x4x256xf32> to vector<4x256xf32>
    %51 = vector.shape_cast %50 : vector<4x256xf32> to vector<4x1x256xf32>
    %52 = arith.mulf %47, %51 : vector<4x1x256xf32>
    %cst_16 = arith.constant dense<0.000000e+00> : vector<4x1xf32>
    %53 = vector.multi_reduction <add>, %52, %cst_16 [2] : vector<4x1x256xf32> to vector<4x1xf32>
    %54 = vector.shape_cast %53 : vector<4x1xf32> to vector<4x1x1xf32>
    %cst_17 = arith.constant dense<0.000000e+00> : vector<4x1xf32>
    %55 = vector.multi_reduction <add>, %51, %cst_17 [2] : vector<4x1x256xf32> to vector<4x1xf32>
    %56 = vector.shape_cast %55 : vector<4x1xf32> to vector<4x1x1xf32>
    %cst_18 = arith.constant 9.99999996E-13 : f32
    %57 = vector.broadcast %cst_18 : f32 to vector<4x1x1xf32>
    %58 = arith.maximumf %56, %57 : vector<4x1x1xf32>
    %59 = tpu.reciprocal %58 {approx = true} : vector<4x1x1xf32> -> vector<4x1x1xf32>
    %60 = arith.mulf %54, %59 : vector<4x1x1xf32>
    %61 = vector.shape_cast %60 : vector<4x1x1xf32> to vector<1x4x1x1xf32>
    %cst_19 = arith.constant dense<0.000000e+00> : vector<1xf32>
    %62 = vector.multi_reduction <add>, %61, %cst_19 [1, 2, 3] : vector<1x4x1x1xf32> to vector<1xf32>
    %63 = vector.shape_cast %62 : vector<1xf32> to vector<1x1x1x1xf32>
    %64 = vector.extract %63[0, 0, 0, 0] : f32 from vector<1x1x1x1xf32>
    %c0_i32 = arith.constant 0 : i32
    %65 = arith.cmpi eq, %arg0, %c0_i32 : i32
    %66 = arith.extui %65 : i1 to i32
    %c0_i32_20 = arith.constant 0 : i32
    %67 = arith.cmpi ne, %66, %c0_i32_20 : i32
    scf.if %67 {
      %cst_25 = arith.constant 0.000000e+00 : f32
      %72 = vector.broadcast %cst_25 : f32 to vector<1x1xf32>
      %c0_26 = arith.constant 0 : index
      %c0_27 = arith.constant 0 : index
      %73 = vector.load %arg3[%c0_26, %c0_27] : memref<1x1xf32, #tpu.memory_space<vmem>>, vector<1x1xf32>
      tpu.vector_store %arg3[%c0_26, %c0_27], %72 {strides = array<i32>} : memref<1x1xf32, #tpu.memory_space<vmem>>, vector<1x1xf32>,
    } else {
    }
    %c0_21 = arith.constant 0 : index
    %c0_22 = arith.constant 0 : index
    %68 = vector.load %arg3[%c0_21, %c0_22] : memref<1x1xf32, #tpu.memory_space<vmem>>, vector<1x1xf32>
    %69 = vector.broadcast %64 : f32 to vector<1x1xf32>
    %70 = arith.addf %68, %69 : vector<1x1xf32>
    %c0_23 = arith.constant 0 : index
    %c0_24 = arith.constant 0 : index
    %71 = vector.load %arg3[%c0_23, %c0_24] : memref<1x1xf32, #tpu.memory_space<vmem>>, vector<1x1xf32>
    tpu.vector_store %arg3[%c0_23, %c0_24], %70 {strides = array<i32>} : memref<1x1xf32, #tpu.memory_space<vmem>>, vector<1x1xf32>,
    return
  }
  func.func @transform_0(%arg0: i32) -> (i32, i32, i32) {
    %c0_i32 = arith.constant 0 : i32
    %c0_i32_0 = arith.constant 0 : i32
    %c0_i32_1 = arith.constant 0 : i32
    return %arg0, %c0_i32, %c0_i32_0 : i32, i32, i32
  }
  func.func @transform_1(%arg0: i32) -> (i32, i32, i32) {
    %c0_i32 = arith.constant 0 : i32
    %c0_i32_0 = arith.constant 0 : i32
    %c0_i32_1 = arith.constant 0 : i32
    return %arg0, %c0_i32, %c0_i32_0 : i32, i32, i32
  }
  func.func @transform_2(%arg0: i32) -> (i32, i32) {
    %c0_i32 = arith.constant 0 : i32
    %c0_i32_0 = arith.constant 0 : i32
    %c0_i32_1 = arith.constant 0 : i32
    return %c0_i32, %c0_i32_0 : i32, i32
  }
}

</mosaic_0001>

<llo_original>
// kernel: tpu_custom_call.1
$region0: #{tpu_custom_call.1}
  #allocation0 [shape = 'u32[]', space=smem, size = 0x4, offset = 0x4, fixed_abs, tag = 'smem constant byte address 0x4 - core index']
  #allocation1 [shape = 'u32[144,128]{1,0:T(1,128)}', space=vmem, size = 0x12000, scoped, tag = 'internal scratch']
  %s0 = inlined_call_operand.hbm [shape: f32[4,4,256], index: 0, kind: input, shape index: {}]
  %s1 = inlined_call_operand.hbm [shape: f32[4,4,256], index: 1, kind: input, shape index: {}]
  %s2 = inlined_call_operand.hbm [shape: f32[1,1], index: 2, kind: output, shape index: {}]
  %s3 = sld [smem:[#allocation0]]
  $region30: #{tpu_custom_call.1} parent=0
    _
  %s5 = ssub.s32 1, %s3
  %s6 = scalar_select 0, %s5, %s3
  $region1: #{tpu_custom_call.1} parent=0
    #allocation2 [shape = 'u8[16384]{0}', space=vmem, size = 0x4000, scoped, tag = 'input window, operand 0, single buffered']
    #allocation3 [shape = 's32[1]{0}', space=sflag, size = 0x4, scoped, tag = 'scoped memory for tpu_custom_call.1']
    #allocation4 [shape = 's32[1]{0}', space=sflag, size = 0x4, scoped, tag = 'scoped memory for tpu_custom_call.1']
    #allocation5 [shape = 'u8[16384]{0}', space=vmem, size = 0x4000, scoped, tag = 'input window, operand 1, single buffered']
    #allocation6 [shape = 's32[1]{0}', space=sflag, size = 0x4, scoped, tag = 'scoped memory for tpu_custom_call.1']
    #allocation7 [shape = 'u8[512]{0}', space=vmem, size = 0x400, scoped, tag = 'output window, operand 0, single buffered']
    %7 = vsyncpa [#allocation3], 0
    %8 = vsyncpa [#allocation6], 0
    %9 = vsyncpa [#allocation4], 0
    // Predicated region
    $region2: #{tpu_custom_call.1} parent=1 // pred_check
      _
    $region3: #{tpu_custom_call.1} parent=1 // pred_check_branch
      %11 = sbr.rel (0) target = $region5
    $region4: #{tpu_custom_call.1} parent=1 // pred_region
      %s13 = ssub.s32 512, 512
      %14 = vsyncadd [#allocation3], %s13
      %s15 = sshll.u32 [#allocation2], 4
      %s16 = int_to_ptr.vmem [resolvable:$true] %s15
      %21 = dma.hbm_to_vmem [thread:$0]  %s0, 512, %s16, [#allocation3], 128, 128, 8
    $region5: #{tpu_custom_call.1} parent=1 // pred_fallthru
      _
    // Predicated region
    $region6: #{tpu_custom_call.1} parent=1 // pred_check
      _
    $region7: #{tpu_custom_call.1} parent=1 // pred_check_branch
      %23 = sbr.rel (0) target = $region9
    $region8: #{tpu_custom_call.1} parent=1 // pred_region
      %s25 = ssub.s32 512, 512
      %26 = vsyncadd [#allocation6], %s25
      %s27 = sshll.u32 [#allocation5], 4
      %s28 = int_to_ptr.vmem [resolvable:$true] %s27
      %33 = dma.hbm_to_vmem [thread:$0]  %s1, 512, %s28, [#allocation6], 128, 128, 8
    $region9: #{tpu_custom_call.1} parent=1 // pred_fallthru
      _
    // Predicated region
    $region10: #{tpu_custom_call.1} parent=1 // pred_check
      _
    $region11: #{tpu_custom_call.1} parent=1 // pred_check_branch
      %35 = sbr.rel (0) target = $region13
    $region12: #{tpu_custom_call.1} parent=1 // pred_region
      %36 = dma.done [#allocation3], 512
    $region13: #{tpu_custom_call.1} parent=1 // pred_fallthru
      _
    // Predicated region
    $region14: #{tpu_custom_call.1} parent=1 // pred_check
      _
    $region15: #{tpu_custom_call.1} parent=1 // pred_check_branch
      %38 = sbr.rel (0) target = $region17
    $region16: #{tpu_custom_call.1} parent=1 // pred_region
      %39 = dma.done [#allocation6], 512
    $region17: #{tpu_custom_call.1} parent=1 // pred_fallthru
      _
    %v40 = vld [vmem:[#allocation2] sm:$0xff]
    %v41 = vld [vmem:[#allocation2 + $0x8] sm:$0xff]
    %v42 = vld [vmem:[#allocation2 + $0x10] sm:$0xff]
    %v43 = vld [vmem:[#allocation2 + $0x18] sm:$0xff]
    %v44 = vld [vmem:[#allocation5] sm:$0xff]
    %v45 = vld [vmem:[#allocation5 + $0x8] sm:$0xff]
    %v46 = vld [vmem:[#allocation5 + $0x10] sm:$0xff]
    %v47 = vld [vmem:[#allocation5 + $0x18] sm:$0xff]
    %v52 = vcombine.high %v44, %v44
    %v53 = vcombine.high %v45, %v45
    %v54 = vcombine.high %v46, %v46
    %v55 = vcombine.high %v47, %v47
    %vm60 = vcmask 1043456
    %v61 = vsel %vm60, %v44, -inf
    %v62 = vrot.slane %v61, 4
    %v63 = vmax.f32 %v61, %v62
    %v64 = vrot.slane %v63, 2
    %v65 = vmax.f32 %v63, %v64
    %v66 = vrot.slane %v65, 1
    %v67 = vmax.f32 %v65, %v66
    %v68 = vsel %vm60, %v52, -inf
    %v69 = vrot.slane %v68, 4
    %v70 = vmax.f32 %v68, %v69
    %v71 = vrot.slane %v70, 2
    %v72 = vmax.f32 %v70, %v71
    %v73 = vrot.slane %v72, 1
    %v74 = vmax.f32 %v72, %v73
    %v75 = vsel %vm60, %v45, -inf
    %v76 = vrot.slane %v75, 4
    %v77 = vmax.f32 %v75, %v76
    %v78 = vrot.slane %v77, 2
    %v79 = vmax.f32 %v77, %v78
    %v80 = vrot.slane %v79, 1
    %v81 = vmax.f32 %v79, %v80
    %v82 = vsel %vm60, %v53, -inf
    %v83 = vrot.slane %v82, 4
    %v84 = vmax.f32 %v82, %v83
    %v85 = vrot.slane %v84, 2
    %v86 = vmax.f32 %v84, %v85
    %v87 = vrot.slane %v86, 1
    %v88 = vmax.f32 %v86, %v87
    %v89 = vsel %vm60, %v46, -inf
    %v90 = vrot.slane %v89, 4
    %v91 = vmax.f32 %v89, %v90
    %v92 = vrot.slane %v91, 2
    %v93 = vmax.f32 %v91, %v92
    %v94 = vrot.slane %v93, 1
    %v95 = vmax.f32 %v93, %v94
    %v96 = vsel %vm60, %v54, -inf
    %v97 = vrot.slane %v96, 4
    %v98 = vmax.f32 %v96, %v97
    %v99 = vrot.slane %v98, 2
    %v100 = vmax.f32 %v98, %v99
    %v101 = vrot.slane %v100, 1
    %v102 = vmax.f32 %v100, %v101
    %v103 = vsel %vm60, %v47, -inf
    %v104 = vrot.slane %v103, 4
    %v105 = vmax.f32 %v103, %v104
    %v106 = vrot.slane %v105, 2
    %v107 = vmax.f32 %v105, %v106
    %v108 = vrot.slane %v107, 1
    %v109 = vmax.f32 %v107, %v108
    %v110 = vsel %vm60, %v55, -inf
    %v111 = vrot.slane %v110, 4
    %v112 = vmax.f32 %v110, %v111
    %v113 = vrot.slane %v112, 2
    %v114 = vmax.f32 %v112, %v113
    %v115 = vrot.slane %v114, 1
    %v116 = vmax.f32 %v114, %v115
    %v121 = vcombine.high %v40, %v40
    %v122 = vcombine.high %v41, %v41
    %v123 = vcombine.high %v42, %v42
    %v124 = vcombine.high %v43, %v43
    %v129 = vsel %vm60, %v40, -inf
    %v130 = vrot.slane %v129, 4
    %v131 = vmax.f32 %v129, %v130
    %v132 = vrot.slane %v131, 2
    %v133 = vmax.f32 %v131, %v132
    %v134 = vrot.slane %v133, 1
    %v135 = vmax.f32 %v133, %v134
    %v136 = vsel %vm60, %v121, -inf
    %v137 = vrot.slane %v136, 4
    %v138 = vmax.f32 %v136, %v137
    %v139 = vrot.slane %v138, 2
    %v140 = vmax.f32 %v138, %v139
    %v141 = vrot.slane %v140, 1
    %v142 = vmax.f32 %v140, %v141
    %v143 = vsel %vm60, %v41, -inf
    %v144 = vrot.slane %v143, 4
    %v145 = vmax.f32 %v143, %v144
    %v146 = vrot.slane %v145, 2
    %v147 = vmax.f32 %v145, %v146
    %v148 = vrot.slane %v147, 1
    %v149 = vmax.f32 %v147, %v148
    %v150 = vsel %vm60, %v122, -inf
    %v151 = vrot.slane %v150, 4
    %v152 = vmax.f32 %v150, %v151
    %v153 = vrot.slane %v152, 2
    %v154 = vmax.f32 %v152, %v153
    %v155 = vrot.slane %v154, 1
    %v156 = vmax.f32 %v154, %v155
    %v157 = vsel %vm60, %v42, -inf
    %v158 = vrot.slane %v157, 4
    %v159 = vmax.f32 %v157, %v158
    %v160 = vrot.slane %v159, 2
    %v161 = vmax.f32 %v159, %v160
    %v162 = vrot.slane %v161, 1
    %v163 = vmax.f32 %v161, %v162
    %v164 = vsel %vm60, %v123, -inf
    %v165 = vrot.slane %v164, 4
    %v166 = vmax.f32 %v164, %v165
    %v167 = vrot.slane %v166, 2
    %v168 = vmax.f32 %v166, %v167
    %v169 = vrot.slane %v168, 1
    %v170 = vmax.f32 %v168, %v169
    %v171 = vsel %vm60, %v43, -inf
    %v172 = vrot.slane %v171, 4
    %v173 = vmax.f32 %v171, %v172
    %v174 = vrot.slane %v173, 2
    %v175 = vmax.f32 %v173, %v174
    %v176 = vrot.slane %v175, 1
    %v177 = vmax.f32 %v175, %v176
    %v178 = vsel %vm60, %v124, -inf
    %v179 = vrot.slane %v178, 4
    %v180 = vmax.f32 %v178, %v179
    %v181 = vrot.slane %v180, 2
    %v182 = vmax.f32 %v180, %v181
    %v183 = vrot.slane %v182, 1
    %v184 = vmax.f32 %v182, %v183
    %v193 = vcombine.low %v67, %v74
    %v194 = vcombine.low %v81, %v88
    %v195 = vcombine.low %v95, %v102
    %v196 = vcombine.low %v109, %v116
    %vm201 = vcmp.eq.f32.partialorder %v44, %v193
    %vm202 = vcmp.eq.f32.partialorder %v45, %v194
    %vm203 = vcmp.eq.f32.partialorder %v46, %v195
    %vm204 = vcmp.eq.f32.partialorder %v47, %v196
    %v205 = vsel %vm201, 1, 0
    %v206 = vsel %vm202, 1, 0
    %v207 = vsel %vm203, 1, 0
    %v208 = vsel %vm204, 1, 0
    %v209 = vcvt.s32.f32 %v205
    %v210 = vcvt.s32.f32 %v206
    %v211 = vcvt.s32.f32 %v207
    %v212 = vcvt.s32.f32 %v208
    %v221 = vcombine.low %v135, %v142
    %v222 = vcombine.low %v149, %v156
    %v223 = vcombine.low %v163, %v170
    %v224 = vcombine.low %v177, %v184
    %vm229 = vcmp.eq.f32.partialorder %v40, %v221
    %vm230 = vcmp.eq.f32.partialorder %v41, %v222
    %vm231 = vcmp.eq.f32.partialorder %v42, %v223
    %vm232 = vcmp.eq.f32.partialorder %v43, %v224
    %v233 = vsel %vm229, 1, 0
    %v234 = vsel %vm230, 1, 0
    %v235 = vsel %vm231, 1, 0
    %v236 = vsel %vm232, 1, 0
    %v237 = vcvt.s32.f32 %v233
    %v238 = vcvt.s32.f32 %v234
    %v239 = vcvt.s32.f32 %v235
    %v240 = vcvt.s32.f32 %v236
    %v241 = vsub.f32 %v209, %v237
    %v242 = vsub.f32 %v210, %v238
    %v243 = vsub.f32 %v211, %v239
    %v244 = vsub.f32 %v212, %v240
    %v245 = vmul.f32 %v241, %v241
    %v246 = vmul.f32 %v242, %v242
    %v247 = vmul.f32 %v243, %v243
    %v248 = vmul.f32 %v244, %v244
    %v253 = vcombine.high %v245, %v245
    %v254 = vcombine.high %v246, %v246
    %v255 = vcombine.high %v247, %v247
    %v256 = vcombine.high %v248, %v248
    %v261 = vsel %vm60, %v245, 0.0
    %v262 = vsel %vm60, %v253, 0.0
    %v263 = vadd.f32 %v261, %v262
    %264 = vadd.xlane.f32.xlu0 %v263
    %v265 = vpop.xlane.xlu0 %264
    %v266 = vsel %vm60, %v246, 0.0
    %v267 = vsel %vm60, %v254, 0.0
    %v268 = vadd.f32 %v266, %v267
    %269 = vadd.xlane.f32.xlu0 %v268
    %v270 = vpop.xlane.xlu0 %269
    %v271 = vsel %vm60, %v247, 0.0
    %v272 = vsel %vm60, %v255, 0.0
    %v273 = vadd.f32 %v271, %v272
    %274 = vadd.xlane.f32.xlu0 %v273
    %v275 = vpop.xlane.xlu0 %274
    %v276 = vsel %vm60, %v248, 0.0
    %v277 = vsel %vm60, %v256, 0.0
    %v278 = vadd.f32 %v276, %v277
    %279 = vadd.xlane.f32.xlu0 %v278
    %v280 = vpop.xlane.xlu0 %279
    %v281 = vmul.f32 %v265, 0.00390625
    %v282 = vmul.f32 %v270, 0.00390625
    %v283 = vmul.f32 %v275, 0.00390625
    %v284 = vmul.f32 %v280, 0.00390625
    %v285 = vsub.f32 1.0, %v281
    %v286 = vsub.f32 1.0, %v282
    %v287 = vsub.f32 1.0, %v283
    %v288 = vsub.f32 1.0, %v284
    %vm289 = vcmp.gt.f32.partialorder %v285, 0.8
    %vm290 = vcmp.gt.f32.partialorder %v286, 0.8
    %vm291 = vcmp.gt.f32.partialorder %v287, 0.8
    %vm292 = vcmp.gt.f32.partialorder %v288, 0.8
    %v293 = vsel %vm289, 1.0, %v285
    %v294 = vsel %vm290, 1.0, %v286
    %v295 = vsel %vm291, 1.0, %v287
    %v296 = vsel %vm292, 1.0, %v288
    %v297 = vlaneseq
    %v298 = vshrl.u32 %v297, 7
    %v300 = vunpack.c.l.s4 839922192
    %v301 = vunpack.c.0.s8 %v300
    %v302 = vlaneseq
    %v303 = vshrl.u32 %v302, 7
    %v304 = vsub.s32 %v301, %v303
    %v305 = vrot.slane %v298, %v304
    %v306 = vsel %vm201, %v305, 4
    %v307 = vsel %vm202, %v305, 4
    %v308 = vsel %vm203, %v305, 4
    %v309 = vsel %vm204, %v305, 4
    %v310 = vcombine.high %v306, %v306
    %v311 = vcombine.high %v307, %v307
    %v312 = vcombine.high %v308, %v308
    %v313 = vcombine.high %v309, %v309
    %v314 = vsel %vm60, %v306, 2147483647
    %v315 = vrot.slane %v314, 4
    %vm316 = vcmp.lt.s32.totalorder %v314, %v315
    %v317 = vsel %vm316, %v314, %v315
    %v318 = vrot.slane %v317, 2
    %vm319 = vcmp.lt.s32.totalorder %v317, %v318
    %v320 = vsel %vm319, %v317, %v318
    %v321 = vrot.slane %v320, 1
    %vm322 = vcmp.lt.s32.totalorder %v320, %v321
    %v323 = vsel %vm322, %v320, %v321
    %v324 = vsel %vm60, %v310, 2147483647
    %v325 = vrot.slane %v324, 4
    %vm326 = vcmp.lt.s32.totalorder %v324, %v325
    %v327 = vsel %vm326, %v324, %v325
    %v328 = vrot.slane %v327, 2
    %vm329 = vcmp.lt.s32.totalorder %v327, %v328
    %v330 = vsel %vm329, %v327, %v328
    %v331 = vrot.slane %v330, 1
    %vm332 = vcmp.lt.s32.totalorder %v330, %v331
    %v333 = vsel %vm332, %v330, %v331
    %v334 = vsel %vm60, %v307, 2147483647
    %v335 = vrot.slane %v334, 4
    %vm336 = vcmp.lt.s32.totalorder %v334, %v335
    %v337 = vsel %vm336, %v334, %v335
    %v338 = vrot.slane %v337, 2
    %vm339 = vcmp.lt.s32.totalorder %v337, %v338
    %v340 = vsel %vm339, %v337, %v338
    %v341 = vrot.slane %v340, 1
    %vm342 = vcmp.lt.s32.totalorder %v340, %v341
    %v343 = vsel %vm342, %v340, %v341
    %v344 = vsel %vm60, %v311, 2147483647
    %v345 = vrot.slane %v344, 4
    %vm346 = vcmp.lt.s32.totalorder %v344, %v345
    %v347 = vsel %vm346, %v344, %v345
    %v348 = vrot.slane %v347, 2
    %vm349 = vcmp.lt.s32.totalorder %v347, %v348
    %v350 = vsel %vm349, %v347, %v348
    %v351 = vrot.slane %v350, 1
    %vm352 = vcmp.lt.s32.totalorder %v350, %v351
    %v353 = vsel %vm352, %v350, %v351
    %v354 = vsel %vm60, %v308, 2147483647
    %v355 = vrot.slane %v354, 4
    %vm356 = vcmp.lt.s32.totalorder %v354, %v355
    %v357 = vsel %vm356, %v354, %v355
    %v358 = vrot.slane %v357, 2
    %vm359 = vcmp.lt.s32.totalorder %v357, %v358
    %v360 = vsel %vm359, %v357, %v358
    %v361 = vrot.slane %v360, 1
    %vm362 = vcmp.lt.s32.totalorder %v360, %v361
    %v363 = vsel %vm362, %v360, %v361
    %v364 = vsel %vm60, %v312, 2147483647
    %v365 = vrot.slane %v364, 4
    %vm366 = vcmp.lt.s32.totalorder %v364, %v365
    %v367 = vsel %vm366, %v364, %v365
    %v368 = vrot.slane %v367, 2
    %vm369 = vcmp.lt.s32.totalorder %v367, %v368
    %v370 = vsel %vm369, %v367, %v368
    %v371 = vrot.slane %v370, 1
    %vm372 = vcmp.lt.s32.totalorder %v370, %v371
    %v373 = vsel %vm372, %v370, %v371
    %v374 = vsel %vm60, %v309, 2147483647
    %v375 = vrot.slane %v374, 4
    %vm376 = vcmp.lt.s32.totalorder %v374, %v375
    %v377 = vsel %vm376, %v374, %v375
    %v378 = vrot.slane %v377, 2
    %vm379 = vcmp.lt.s32.totalorder %v377, %v378
    %v380 = vsel %vm379, %v377, %v378
    %v381 = vrot.slane %v380, 1
    %vm382 = vcmp.lt.s32.totalorder %v380, %v381
    %v383 = vsel %vm382, %v380, %v381
    %v384 = vsel %vm60, %v313, 2147483647
    %v385 = vrot.slane %v384, 4
    %vm386 = vcmp.lt.s32.totalorder %v384, %v385
    %v387 = vsel %vm386, %v384, %v385
    %v388 = vrot.slane %v387, 2
    %vm389 = vcmp.lt.s32.totalorder %v387, %v388
    %v390 = vsel %vm389, %v387, %v388
    %v391 = vrot.slane %v390, 1
    %vm392 = vcmp.lt.s32.totalorder %v390, %v391
    %v393 = vsel %vm392, %v390, %v391
    %v394 = vsub.f32 %v40, %v221
    %v395 = vsub.f32 %v41, %v222
    %v396 = vsub.f32 %v42, %v223
    %v397 = vsub.f32 %v43, %v224
    %v398 = vmul.f32 %v394, 1.442695
    %v399 = vpow.pop %v398
    %v400 = vmul.f32 %v395, 1.442695
    %v401 = vpow.pop %v400
    %v402 = vmul.f32 %v396, 1.442695
    %v403 = vpow.pop %v402
    %v404 = vmul.f32 %v397, 1.442695
    %v405 = vpow.pop %v404
    %v410 = vcombine.high %v399, %v399
    %v411 = vcombine.high %v401, %v401
    %v412 = vcombine.high %v403, %v403
    %v413 = vcombine.high %v405, %v405
    %v418 = vsel %vm60, %v399, 0.0
    %v419 = vrot.slane %v418, 4
    %v420 = vadd.f32 %v418, %v419
    %v421 = vrot.slane %v420, 2
    %v422 = vadd.f32 %v420, %v421
    %v423 = vrot.slane %v422, 1
    %v424 = vadd.f32 %v422, %v423
    %v425 = vsel %vm60, %v410, 0.0
    %v426 = vrot.slane %v425, 4
    %v427 = vadd.f32 %v425, %v426
    %v428 = vrot.slane %v427, 2
    %v429 = vadd.f32 %v427, %v428
    %v430 = vrot.slane %v429, 1
    %v431 = vadd.f32 %v429, %v430
    %v432 = vsel %vm60, %v401, 0.0
    %v433 = vrot.slane %v432, 4
    %v434 = vadd.f32 %v432, %v433
    %v435 = vrot.slane %v434, 2
    %v436 = vadd.f32 %v434, %v435
    %v437 = vrot.slane %v436, 1
    %v438 = vadd.f32 %v436, %v437
    %v439 = vsel %vm60, %v411, 0.0
    %v440 = vrot.slane %v439, 4
    %v441 = vadd.f32 %v439, %v440
    %v442 = vrot.slane %v441, 2
    %v443 = vadd.f32 %v441, %v442
    %v444 = vrot.slane %v443, 1
    %v445 = vadd.f32 %v443, %v444
    %v446 = vsel %vm60, %v403, 0.0
    %v447 = vrot.slane %v446, 4
    %v448 = vadd.f32 %v446, %v447
    %v449 = vrot.slane %v448, 2
    %v450 = vadd.f32 %v448, %v449
    %v451 = vrot.slane %v450, 1
    %v452 = vadd.f32 %v450, %v451
    %v453 = vsel %vm60, %v412, 0.0
    %v454 = vrot.slane %v453, 4
    %v455 = vadd.f32 %v453, %v454
    %v456 = vrot.slane %v455, 2
    %v457 = vadd.f32 %v455, %v456
    %v458 = vrot.slane %v457, 1
    %v459 = vadd.f32 %v457, %v458
    %v460 = vsel %vm60, %v405, 0.0
    %v461 = vrot.slane %v460, 4
    %v462 = vadd.f32 %v460, %v461
    %v463 = vrot.slane %v462, 2
    %v464 = vadd.f32 %v462, %v463
    %v465 = vrot.slane %v464, 1
    %v466 = vadd.f32 %v464, %v465
    %v467 = vsel %vm60, %v413, 0.0
    %v468 = vrot.slane %v467, 4
    %v469 = vadd.f32 %v467, %v468
    %v470 = vrot.slane %v469, 2
    %v471 = vadd.f32 %v469, %v470
    %v472 = vrot.slane %v471, 1
    %v473 = vadd.f32 %v471, %v472
    %v474 = vlog2.pop %v424
    %v475 = vmul.f32 %v474, 0.6931472
    %v476 = vlog2.pop %v431
    %v477 = vmul.f32 %v476, 0.6931472
    %v478 = vlog2.pop %v438
    %v479 = vmul.f32 %v478, 0.6931472
    %v480 = vlog2.pop %v445
    %v481 = vmul.f32 %v480, 0.6931472
    %v482 = vlog2.pop %v452
    %v483 = vmul.f32 %v482, 0.6931472
    %v484 = vlog2.pop %v459
    %v485 = vmul.f32 %v484, 0.6931472
    %v486 = vlog2.pop %v466
    %v487 = vmul.f32 %v486, 0.6931472
    %v488 = vlog2.pop %v473
    %v489 = vmul.f32 %v488, 0.6931472
    %v498 = vcombine.low %v475, %v477
    %v499 = vcombine.low %v479, %v481
    %v500 = vcombine.low %v483, %v485
    %v501 = vcombine.low %v487, %v489
    %v506 = vsub.f32 %v394, %v498
    %v507 = vsub.f32 %v395, %v499
    %v508 = vsub.f32 %v396, %v500
    %v509 = vsub.f32 %v397, %v501
    %vm510 = vcmp.eq.s32.totalorder %v298, %v323
    %vm511 = vcmp.eq.s32.totalorder %v298, %v333
    %vm512 = vcmp.eq.s32.totalorder %v298, %v343
    %vm513 = vcmp.eq.s32.totalorder %v298, %v353
    %vm514 = vcmp.eq.s32.totalorder %v298, %v363
    %vm515 = vcmp.eq.s32.totalorder %v298, %v373
    %vm516 = vcmp.eq.s32.totalorder %v298, %v383
    %vm517 = vcmp.eq.s32.totalorder %v298, %v393
    %v518 = vsel %vm510, 1, 0
    %v519 = vsel %vm511, 1, 0
    %v520 = vsel %vm512, 1, 0
    %v521 = vsel %vm513, 1, 0
    %v522 = vsel %vm514, 1, 0
    %v523 = vsel %vm515, 1, 0
    %v524 = vsel %vm516, 1, 0
    %v525 = vsel %vm517, 1, 0
    %v526 = vcvt.s32.f32 %v518
    %v527 = vcvt.s32.f32 %v519
    %v528 = vcvt.s32.f32 %v520
    %v529 = vcvt.s32.f32 %v521
    %v530 = vcvt.s32.f32 %v522
    %v531 = vcvt.s32.f32 %v523
    %v532 = vcvt.s32.f32 %v524
    %v533 = vcvt.s32.f32 %v525
    %v542 = vcombine.low %v526, %v527
    %v543 = vcombine.low %v528, %v529
    %v544 = vcombine.low %v530, %v531
    %v545 = vcombine.low %v532, %v533
    %v550 = vmul.f32 %v506, %v542
    %v551 = vmul.f32 %v507, %v543
    %v552 = vmul.f32 %v508, %v544
    %v553 = vmul.f32 %v509, %v545
    %v558 = vcombine.high %v550, %v550
    %v559 = vcombine.high %v551, %v551
    %v560 = vcombine.high %v552, %v552
    %v561 = vcombine.high %v553, %v553
    %v566 = vsel %vm60, %v550, 0.0
    %v567 = vrot.slane %v566, 4
    %v568 = vadd.f32 %v566, %v567
    %v569 = vrot.slane %v568, 2
    %v570 = vadd.f32 %v568, %v569
    %v571 = vrot.slane %v570, 1
    %v572 = vadd.f32 %v570, %v571
    %v573 = vsel %vm60, %v558, 0.0
    %v574 = vrot.slane %v573, 4
    %v575 = vadd.f32 %v573, %v574
    %v576 = vrot.slane %v575, 2
    %v577 = vadd.f32 %v575, %v576
    %v578 = vrot.slane %v577, 1
    %v579 = vadd.f32 %v577, %v578
    %v580 = vsel %vm60, %v551, 0.0
    %v581 = vrot.slane %v580, 4
    %v582 = vadd.f32 %v580, %v581
    %v583 = vrot.slane %v582, 2
    %v584 = vadd.f32 %v582, %v583
    %v585 = vrot.slane %v584, 1
    %v586 = vadd.f32 %v584, %v585
    %v587 = vsel %vm60, %v559, 0.0
    %v588 = vrot.slane %v587, 4
    %v589 = vadd.f32 %v587, %v588
    %v590 = vrot.slane %v589, 2
    %v591 = vadd.f32 %v589, %v590
    %v592 = vrot.slane %v591, 1
    %v593 = vadd.f32 %v591, %v592
    %v594 = vsel %vm60, %v552, 0.0
    %v595 = vrot.slane %v594, 4
    %v596 = vadd.f32 %v594, %v595
    %v597 = vrot.slane %v596, 2
    %v598 = vadd.f32 %v596, %v597
    %v599 = vrot.slane %v598, 1
    %v600 = vadd.f32 %v598, %v599
    %v601 = vsel %vm60, %v560, 0.0
    %v602 = vrot.slane %v601, 4
    %v603 = vadd.f32 %v601, %v602
    %v604 = vrot.slane %v603, 2
    %v605 = vadd.f32 %v603, %v604
    %v606 = vrot.slane %v605, 1
    %v607 = vadd.f32 %v605, %v606
    %v608 = vsel %vm60, %v553, 0.0
    %v609 = vrot.slane %v608, 4
    %v610 = vadd.f32 %v608, %v609
    %v611 = vrot.slane %v610, 2
    %v612 = vadd.f32 %v610, %v611
    %v613 = vrot.slane %v612, 1
    %v614 = vadd.f32 %v612, %v613
    %v615 = vsel %vm60, %v561, 0.0
    %v616 = vrot.slane %v615, 4
    %v617 = vadd.f32 %v615, %v616
    %v618 = vrot.slane %v617, 2
    %v619 = vadd.f32 %v617, %v618
    %v620 = vrot.slane %v619, 1
    %v621 = vadd.f32 %v619, %v620
    %v622 = vsub.f32 0.0, %v572
    %v623 = vsub.f32 0.0, %v579
    %v624 = vsub.f32 0.0, %v586
    %v625 = vsub.f32 0.0, %v593
    %v626 = vsub.f32 0.0, %v600
    %v627 = vsub.f32 0.0, %v607
    %v628 = vsub.f32 0.0, %v614
    %v629 = vsub.f32 0.0, %v621
    %v630 = vmul.f32 %v293, %v526
    %v631 = vmul.f32 %v293, %v527
    %v632 = vmul.f32 %v294, %v528
    %v633 = vmul.f32 %v294, %v529
    %v634 = vmul.f32 %v295, %v530
    %v635 = vmul.f32 %v295, %v531
    %v636 = vmul.f32 %v296, %v532
    %v637 = vmul.f32 %v296, %v533
    %v638 = vsel %vm60, %v630, 0.0
    %v639 = vrot.slane %v638, 4
    %v640 = vadd.f32 %v638, %v639
    %v641 = vrot.slane %v640, 2
    %v642 = vadd.f32 %v640, %v641
    %v643 = vrot.slane %v642, 1
    %v644 = vadd.f32 %v642, %v643
    %v645 = vsel %vm60, %v631, 0.0
    %v646 = vrot.slane %v645, 4
    %v647 = vadd.f32 %v645, %v646
    %v648 = vrot.slane %v647, 2
    %v649 = vadd.f32 %v647, %v648
    %v650 = vrot.slane %v649, 1
    %v651 = vadd.f32 %v649, %v650
    %v652 = vsel %vm60, %v632, 0.0
    %v653 = vrot.slane %v652, 4
    %v654 = vadd.f32 %v652, %v653
    %v655 = vrot.slane %v654, 2
    %v656 = vadd.f32 %v654, %v655
    %v657 = vrot.slane %v656, 1
    %v658 = vadd.f32 %v656, %v657
    %v659 = vsel %vm60, %v633, 0.0
    %v660 = vrot.slane %v659, 4
    %v661 = vadd.f32 %v659, %v660
    %v662 = vrot.slane %v661, 2
    %v663 = vadd.f32 %v661, %v662
    %v664 = vrot.slane %v663, 1
    %v665 = vadd.f32 %v663, %v664
    %v666 = vsel %vm60, %v634, 0.0
    %v667 = vrot.slane %v666, 4
    %v668 = vadd.f32 %v666, %v667
    %v669 = vrot.slane %v668, 2
    %v670 = vadd.f32 %v668, %v669
    %v671 = vrot.slane %v670, 1
    %v672 = vadd.f32 %v670, %v671
    %v673 = vsel %vm60, %v635, 0.0
    %v674 = vrot.slane %v673, 4
    %v675 = vadd.f32 %v673, %v674
    %v676 = vrot.slane %v675, 2
    %v677 = vadd.f32 %v675, %v676
    %v678 = vrot.slane %v677, 1
    %v679 = vadd.f32 %v677, %v678
    %v680 = vsel %vm60, %v636, 0.0
    %v681 = vrot.slane %v680, 4
    %v682 = vadd.f32 %v680, %v681
    %v683 = vrot.slane %v682, 2
    %v684 = vadd.f32 %v682, %v683
    %v685 = vrot.slane %v684, 1
    %v686 = vadd.f32 %v684, %v685
    %v687 = vsel %vm60, %v637, 0.0
    %v688 = vrot.slane %v687, 4
    %v689 = vadd.f32 %v687, %v688
    %v690 = vrot.slane %v689, 2
    %v691 = vadd.f32 %v689, %v690
    %v692 = vrot.slane %v691, 1
    %v693 = vadd.f32 %v691, %v692
    %v694 = vmul.f32 %v622, %v644
    %v695 = vmul.f32 %v623, %v651
    %v696 = vmul.f32 %v624, %v658
    %v697 = vmul.f32 %v625, %v665
    %v698 = vmul.f32 %v626, %v672
    %v699 = vmul.f32 %v627, %v679
    %v700 = vmul.f32 %v628, %v686
    %v701 = vmul.f32 %v629, %v693
    %v702 = vadd.f32 %v694, %v695
    %703 = vadd.xlane.f32.xlu0 %v702
    %v704 = vpop.xlane.xlu0 %703
    %v705 = vadd.f32 %v696, %v697
    %706 = vadd.xlane.f32.xlu0 %v705
    %v707 = vpop.xlane.xlu0 %706
    %v708 = vadd.f32 %v698, %v699
    %709 = vadd.xlane.f32.xlu0 %v708
    %v710 = vpop.xlane.xlu0 %709
    %v711 = vadd.f32 %v700, %v701
    %712 = vadd.xlane.f32.xlu0 %v711
    %v713 = vpop.xlane.xlu0 %712
    %v714 = vadd.f32 %v644, %v651
    %715 = vadd.xlane.f32.xlu0 %v714
    %v716 = vpop.xlane.xlu0 %715
    %v717 = vadd.f32 %v658, %v665
    %718 = vadd.xlane.f32.xlu0 %v717
    %v719 = vpop.xlane.xlu0 %718
    %v720 = vadd.f32 %v672, %v679
    %721 = vadd.xlane.f32.xlu0 %v720
    %v722 = vpop.xlane.xlu0 %721
    %v723 = vadd.f32 %v686, %v693
    %724 = vadd.xlane.f32.xlu0 %v723
    %v725 = vpop.xlane.xlu0 %724
    %v726 = vmax.f32 %v716, 1e-12
    %v727 = vmax.f32 %v719, 1e-12
    %v728 = vmax.f32 %v722, 1e-12
    %v729 = vmax.f32 %v725, 1e-12
    %v730 = vrcp.pop %v726
    %v731 = vrcp.pop %v727
    %v732 = vrcp.pop %v728
    %v733 = vrcp.pop %v729
    %v734 = vmul.f32 %v704, %v730
    %v735 = vmul.f32 %v707, %v731
    %v736 = vmul.f32 %v710, %v732
    %v737 = vmul.f32 %v713, %v733
    %vm738 = vcmask 0
    %v739 = vsel %vm738, %v734, 0.0
    %v740 = vsel %vm738, %v735, 0.0
    %v741 = vadd.f32 %v739, %v740
    %v742 = vsel %vm738, %v736, 0.0
    %v743 = vadd.f32 %v741, %v742
    %v744 = vsel %vm738, %v737, 0.0
    %v745 = vadd.f32 %v743, %v744
    %746 = vadd.xlane.f32.xlu0 %v745
    %v747 = vpop.xlane.xlu0 %746
    %v748 = vrot.slane %v747, 4
    %v749 = vadd.f32 %v747, %v748
    %v750 = vrot.slane %v749, 2
    %v751 = vadd.f32 %v749, %v750
    %v752 = vrot.slane %v751, 1
    %v753 = vadd.f32 %v751, %v752
    %s754 = vtos %v753
    %p755 = scmp.eq.s32.totalorder 0, 0
    // Predicated region
    $region18: #{tpu_custom_call.1} parent=1 // pred_check
      %p756 = pneg %p755
    $region19: #{tpu_custom_call.1} parent=1 // pred_check_branch
      %758 = sbr.rel (%p756) target = $region21
    $region20: #{tpu_custom_call.1} parent=1 // pred_region
      %759 = vst.msk [vmem:[#allocation7] sm:$0x1] %vm738, 0.0
    $region21: #{tpu_custom_call.1} parent=1 // pred_fallthru
      _
    %v760 = vld [vmem:[#allocation7] sm:$0x1]
    %v761 = vstv %s754
    %v762 = vadd.f32 %v760, %v761
    %763 = vst.msk [vmem:[#allocation7] sm:$0x1] %vm738, %v762
    // Predicated region
    $region22: #{tpu_custom_call.1} parent=1 // pred_check
      _
    $region23: #{tpu_custom_call.1} parent=1 // pred_check_branch
      %765 = sbr.rel (0) target = $region25
    $region24: #{tpu_custom_call.1} parent=1 // pred_region
      %s767 = ssub.s32 16, 16
      %768 = vsyncadd [#allocation4], %s767
      %s770 = sshll.u32 [#allocation7], 4
      %s771 = int_to_ptr.vmem [resolvable:$true] %s770
      %773 = dma.vmem_to_hbm [thread:$0]  %s771, 16, %s2, [#allocation4]
    $region25: #{tpu_custom_call.1} parent=1 // pred_fallthru
      _
    // Predicated region
    $region26: #{tpu_custom_call.1} parent=1 // pred_check
      _
    $region27: #{tpu_custom_call.1} parent=1 // pred_check_branch
      %775 = sbr.rel (0) target = $region29
    $region28: #{tpu_custom_call.1} parent=1 // pred_region
      %776 = dma.done [#allocation4], 16
    $region29: #{tpu_custom_call.1} parent=1 // pred_fallthru
      _
    %777 = vsyncpa [#allocation3], 1
    %778 = vsyncpa [#allocation6], 1
    %779 = vsyncpa [#allocation4], 1

</llo_original>
